<compile_context>
chip_gen: v7x
topology: tpu7x:2x2x1
jax: 0.10.0
libtpu: 0.0.40
codegen_flags: <defaults>
</compile_context>

<pallas_src>
import jax
import jax.numpy as jnp
from jax import lax
from jax.experimental import pallas as pl
from jax.experimental.pallas import tpu as pltpu


def _fusion_kernel(map_ref, w_ref, b_ref, txt_ref, mask_ref, out_ref):
    # map_ref : (1, Cin, T)    per-(batch, spatial-tile) slab of the feature map
    # w_ref   : (Chid, Cin)    1x1 conv weight (shared across grid)
    # b_ref   : (Chid, 1)      conv bias (shared)
    # txt_ref : (1, Chid, 1)   per-batch text vector
    # mask_ref: (1, 1, T)      per-(batch, spatial-tile) video mask
    # out_ref : (1, Chid, T)
    x = map_ref[0]                                   # (Cin, T)
    t = txt_ref[0]                                   # (Chid, 1)

    # Fold the per-batch text vector into the conv:  txt*(W@x + b) == (txt*W)@x + txt*b.
    # The scale is only (Chid, Cin)+(Chid, 1) elements -> amortized over the lane tile.
    w_n = w_ref[...] * t                             # (Chid, Cin)
    b_n = b_ref[...] * t                             # (Chid, 1), lane-broadcast

    # 1x1 conv == per-pixel linear projection on the MXU, already scaled by txt.
    z = jnp.dot(w_n, x, preferred_element_type=jnp.float32) + b_n   # (Chid, T) f32

    # F.normalize(..., p=2, dim=channel, eps=1e-12):
    #   out = z / max(||z||_2, 1e-12) == z * rsqrt(max(sum(z^2), 1e-24))
    # Fuse the video mask into the (1, T) scale so only ONE broadcast multiply over
    # the full (Chid, T) tile remains.
    sq = jnp.sum(z * z, axis=0, keepdims=True)                       # (1, T) sublane reduce (XLU)
    s = lax.rsqrt(jnp.maximum(sq, 1e-24)) * mask_ref[0]              # (1, T) EUP rsqrt, fused mask

    out_ref[0] = (z * s).astype(out_ref.dtype)                       # lane-dense store


def _pick_tile_hw(hw, cin, chid, out_bytes, max_tile_hw, vmem_budget):
    """Fixed 128-multiple spatial tile, bounded by max_tile_hw and the VMEM budget.
    Tiny spatial extents (< 128) fall back to a full-extent block (always legal)."""
    if hw < 128:
        return hw
    # bytes of one (in + out) tile set per spatial position (f32 map+mask, out_bytes out)
    per_lane = 4 * (cin + 1) + out_bytes * chid
    # double-buffered input+output tiles must fit with headroom
    max_lanes = max(128, (vmem_budget // (2 * per_lane)) // 128 * 128)
    tile = min(max_tile_hw, (hw // 128) * 128, max_lanes)
    return max(tile, 128)


def mul_norm_fusion(txt_h, map_h, video_mask, weight, bias, *,
                    max_tile_hw=4096, out_dtype=jnp.float32):
    """
    txt_h      : (N, Chid, 1, 1)  float32
    map_h      : (N, Cin, H, W)   float32   (NCHW, as PyTorch)
    video_mask : (N, 1, H, W)     float32
    weight     : (Chid, Cin, 1, 1)
    bias       : (Chid,)
    returns    : (N, Chid, H, W)  out_dtype (NCHW, matches PyTorch output layout)
    """
    N, Cin, H, W = map_h.shape
    Chid = weight.shape[0]
    HW = H * W
    out_bytes = jnp.dtype(out_dtype).itemsize

    # All of these are free reshapes (row-major order preserved, no transposes).
    map_f = map_h.reshape(N, Cin, HW)
    mask_f = video_mask.reshape(N, 1, HW)
    txt_f = txt_h.reshape(N, Chid, 1)
    w_f = weight.reshape(Chid, Cin)
    b_f = bias.reshape(Chid, 1)

    # Budget sized for v7x's 64 MiB physical VMEM (also fine on v5e/v6e's 128 MiB).
    vmem_budget = 32 * 1024 * 1024
    tile_hw = _pick_tile_hw(HW, Cin, Chid, out_bytes, max_tile_hw, vmem_budget)
    n_tiles = pl.cdiv(HW, tile_hw)   # cdiv grid: tail block is masked, no full-HW fallback

    # Explicit VMEM limit from actual double-buffered need + shared weights + headroom.
    in_tile_bytes = 4 * tile_hw * (Cin + 1)
    out_tile_bytes = out_bytes * tile_hw * Chid
    shared_bytes = 4 * (Chid * Cin + Chid + N * Chid)
    need = 2 * (in_tile_bytes + out_tile_bytes) + shared_bytes + (1 << 20)
    vmem_limit = min(40 * 1024 * 1024, max(need, 16 * 1024 * 1024))

    cost = pl.CostEstimate(
        flops=2 * N * HW * Cin * Chid + 3 * N * HW * Chid,
        transcendentals=N * HW,
        bytes_accessed=(4 * N * HW * (Cin + 1) + out_bytes * N * HW * Chid
                        + 4 * (N * Chid + Chid * Cin + Chid)),
    )

    out_f = pl.pallas_call(
        _fusion_kernel,
        out_shape=jax.ShapeDtypeStruct((N, Chid, HW), out_dtype),
        grid_spec=pltpu.PrefetchScalarGridSpec(
            num_scalar_prefetch=0,
            grid=(N, n_tiles),
            in_specs=[
                pl.BlockSpec((1, Cin, tile_hw), lambda n, t: (n, 0, t)),
                pl.BlockSpec((Chid, Cin), lambda n, t: (0, 0)),
                pl.BlockSpec((Chid, 1), lambda n, t: (0, 0)),
                pl.BlockSpec((1, Chid, 1), lambda n, t: (n, 0, 0)),
                pl.BlockSpec((1, 1, tile_hw), lambda n, t: (n, 0, t)),
            ],
            out_specs=pl.BlockSpec((1, Chid, tile_hw), lambda n, t: (n, 0, t)),
        ),
        compiler_params=pltpu.CompilerParams(
            dimension_semantics=("parallel", "parallel"),
            vmem_limit_bytes=vmem_limit,
        ),
        cost_estimate=cost,
    )(map_f, w_f, b_f, txt_f, mask_f)

    # (N, Chid, HW) -> (N, Chid, H, W): free reshape, no transpose.
    return out_f.reshape(N, Chid, H, W)


def _reference(txt_h, map_h, video_mask, weight, bias):
    # plain-JAX reference mirroring the PyTorch forward (eval mode)
    N, Cin, H, W = map_h.shape
    Chid = weight.shape[0]
    w = weight.reshape(Chid, Cin)
    conv = jnp.einsum('nchw,kc->nkhw', map_h, w) + bias.reshape(1, Chid, 1, 1)
    z = txt_h * conv
    norm = jnp.sqrt(jnp.sum(z * z, axis=1, keepdims=True))
    z_n = z / jnp.maximum(norm, 1e-12)
    return z_n * video_mask


if __name__ == "__main__":
    # small shapes: batch=2, VIS_INPUT_SIZE=4, HIDDEN_SIZE=32, spatial=16x16
    N, Cin, Chid, H, W = 2, 4, 32, 16, 16

    key = jax.random.PRNGKey(0)
    k_txt, k_map, k_mask, k_w = jax.random.split(key, 4)

    txt_h = jax.random.normal(k_txt, (N, Chid, 1, 1), dtype=jnp.float32)
    map_h = jax.random.normal(k_map, (N, Cin, H, W), dtype=jnp.float32)
    video_mask = (jax.random.uniform(k_mask, (N, 1, H, W)) > 0.3).astype(jnp.float32)

    # kaiming_normal_ on conv weight (fan_in = Cin*1*1, gain = sqrt(2)); bias zeros
    std = (2.0 / Cin) ** 0.5
    weight = std * jax.random.normal(k_w, (Chid, Cin, 1, 1), dtype=jnp.float32)
    bias = jnp.zeros((Chid,), dtype=jnp.float32)

    ref = _reference(txt_h, map_h, video_mask, weight, bias)

    # f32 output path (bit-faithful to the PyTorch forward)
    out = mul_norm_fusion(txt_h, map_h, video_mask, weight, bias)
    out = jax.block_until_ready(out)
    assert out.shape == (N, Chid, H, W)
    assert jnp.allclose(out, ref, atol=1e-5, rtol=1e-5)

    # bf16 output path (halves the dominant Chid x HW store traffic; arithmetic stays f32)
    out_bf16 = mul_norm_fusion(txt_h, map_h, video_mask, weight, bias,
                               out_dtype=jnp.bfloat16)
    out_bf16 = jax.block_until_ready(out_bf16)
    assert out_bf16.shape == (N, Chid, H, W)
    assert jnp.allclose(out_bf16.astype(jnp.float32), ref, atol=1.5e-2, rtol=1.5e-2)

    print("KERNEL_OK")
</pallas_src>

<mosaic_0001>
module attributes {stable_mosaic.version = 11 : i64} {
  func.func @_fusion_kernel(%arg0: i32, %arg1: i32, %arg2: memref<1x4x256xf32, #tpu.memory_space<vmem>>, %arg3: memref<32x4xf32, #tpu.memory_space<vmem>>, %arg4: memref<32x1xf32, #tpu.memory_space<vmem>>, %arg5: memref<1x32x1xf32, #tpu.memory_space<vmem>>, %arg6: memref<1x1x256xf32, #tpu.memory_space<vmem>>, %arg7: memref<1x32x256xf32, #tpu.memory_space<vmem>>) attributes {dimension_semantics = [#tpu.dimension_semantics<parallel>, #tpu.dimension_semantics<parallel>], iteration_bounds = array<i64: 2, 1>, scalar_prefetch = 0 : i64, scratch_operands = 0 : i64, tpu.core_type = #tpu.core_type<tc>, window_params = [{transform_indices = @transform_0, window_bounds = array<i64: 1, 4, 256>}, {pipeline_mode = #tpu.pipeline_mode<synchronous>, transform_indices = @transform_1, window_bounds = array<i64: 32, 4>}, {pipeline_mode = #tpu.pipeline_mode<synchronous>, transform_indices = @transform_2, window_bounds = array<i64: 32, 1>}, {transform_indices = @transform_3, window_bounds = array<i64: 1, 32, 1>}, {transform_indices = @transform_4, window_bounds = array<i64: 1, 1, 256>}, {transform_indices = @transform_5, window_bounds = array<i64: 1, 32, 256>}]} {
    %c0 = arith.constant 0 : index
    %c0_0 = arith.constant 0 : index
    %c0_1 = arith.constant 0 : index
    %0 = vector.load %arg2[%c0, %c0_0, %c0_1] : memref<1x4x256xf32, #tpu.memory_space<vmem>>, vector<1x4x256xf32>
    %1 = vector.shape_cast %0 : vector<1x4x256xf32> to vector<4x256xf32>
    %c0_2 = arith.constant 0 : index
    %c0_3 = arith.constant 0 : index
    %c0_4 = arith.constant 0 : index
    %2 = vector.load %arg5[%c0_2, %c0_3, %c0_4] : memref<1x32x1xf32, #tpu.memory_space<vmem>>, vector<1x32x1xf32>
    %3 = vector.shape_cast %2 : vector<1x32x1xf32> to vector<32x1xf32>
    %c0_5 = arith.constant 0 : index
    %c0_6 = arith.constant 0 : index
    %4 = vector.load %arg3[%c0_5, %c0_6] : memref<32x4xf32, #tpu.memory_space<vmem>>, vector<32x4xf32>
    %5 = vector.broadcast %3 : vector<32x1xf32> to vector<32x4xf32>
    %6 = arith.mulf %4, %5 : vector<32x4xf32>
    %c0_7 = arith.constant 0 : index
    %c0_8 = arith.constant 0 : index
    %7 = vector.load %arg4[%c0_7, %c0_8] : memref<32x1xf32, #tpu.memory_space<vmem>>, vector<32x1xf32>
    %8 = arith.mulf %7, %3 : vector<32x1xf32>
    %cst = arith.constant dense<0.000000e+00> : vector<32x256xf32>
    %9 = tpu.matmul %6, %1, %cst {dimension_numbers = #tpu.dot_dimension_numbers<[1], [0], [0], [1], [0, 0, 1, 1], [], []>} : vector<32x4xf32>, vector<4x256xf32>, vector<32x256xf32> -> vector<32x256xf32>
    %10 = vector.broadcast %8 : vector<32x1xf32> to vector<32x256xf32>
    %11 = arith.addf %9, %10 : vector<32x256xf32>
    %12 = arith.mulf %11, %11 : vector<32x256xf32>
    %cst_9 = arith.constant dense<0.000000e+00> : vector<256xf32>
    %13 = vector.multi_reduction <add>, %12, %cst_9 [0] : vector<32x256xf32> to vector<256xf32>
    %14 = vector.shape_cast %13 : vector<256xf32> to vector<1x256xf32>
    %cst_10 = arith.constant 1.000000e-24 : f32
    %15 = vector.broadcast %cst_10 : f32 to vector<1x256xf32>
    %16 = arith.maximumf %14, %15 : vector<1x256xf32>
    %17 = math.rsqrt %16 : vector<1x256xf32>
    %c0_11 = arith.constant 0 : index
    %c0_12 = arith.constant 0 : index
    %c0_13 = arith.constant 0 : index
    %18 = vector.load %arg6[%c0_11, %c0_12, %c0_13] : memref<1x1x256xf32, #tpu.memory_space<vmem>>, vector<1x1x256xf32>
    %19 = vector.shape_cast %18 : vector<1x1x256xf32> to vector<1x256xf32>
    %20 = arith.mulf %17, %19 : vector<1x256xf32>
    %21 = vector.broadcast %20 : vector<1x256xf32> to vector<32x256xf32>
    %22 = arith.mulf %11, %21 : vector<32x256xf32>
    %c0_14 = arith.constant 0 : index
    %c0_15 = arith.constant 0 : index
    %c0_16 = arith.constant 0 : index
    %23 = vector.load %arg7[%c0_14, %c0_15, %c0_16] : memref<1x32x256xf32, #tpu.memory_space<vmem>>, vector<1x32x256xf32>
    %24 = vector.shape_cast %23 : vector<1x32x256xf32> to vector<32x256xf32>
    %25 = vector.shape_cast %22 : vector<32x256xf32> to vector<1x32x256xf32>
    tpu.vector_store %arg7[%c0_14, %c0_15, %c0_16], %25 {strides = array<i32>} : memref<1x32x256xf32, #tpu.memory_space<vmem>>, vector<1x32x256xf32>,
    return
  }
  func.func @transform_0(%arg0: i32, %arg1: i32) -> (i32, i32, i32) {
    %c0_i32 = arith.constant 0 : i32
    %c0_i32_0 = arith.constant 0 : i32
    return %arg0, %c0_i32, %arg1 : i32, i32, i32
  }
  func.func @transform_1(%arg0: i32, %arg1: i32) -> (i32, i32) {
    %c0_i32 = arith.constant 0 : i32
    %c0_i32_0 = arith.constant 0 : i32
    %c0_i32_1 = arith.constant 0 : i32
    return %c0_i32, %c0_i32_0 : i32, i32
  }
  func.func @transform_2(%arg0: i32, %arg1: i32) -> (i32, i32) {
    %c0_i32 = arith.constant 0 : i32
    %c0_i32_0 = arith.constant 0 : i32
    %c0_i32_1 = arith.constant 0 : i32
    return %c0_i32, %c0_i32_0 : i32, i32
  }
  func.func @transform_3(%arg0: i32, %arg1: i32) -> (i32, i32, i32) {
    %c0_i32 = arith.constant 0 : i32
    %c0_i32_0 = arith.constant 0 : i32
    %c0_i32_1 = arith.constant 0 : i32
    return %arg0, %c0_i32, %c0_i32_0 : i32, i32, i32
  }
  func.func @transform_4(%arg0: i32, %arg1: i32) -> (i32, i32, i32) {
    %c0_i32 = arith.constant 0 : i32
    %c0_i32_0 = arith.constant 0 : i32
    return %arg0, %c0_i32, %arg1 : i32, i32, i32
  }
  func.func @transform_5(%arg0: i32, %arg1: i32) -> (i32, i32, i32) {
    %c0_i32 = arith.constant 0 : i32
    %c0_i32_0 = arith.constant 0 : i32
    return %arg0, %c0_i32, %arg1 : i32, i32, i32
  }
}

</mosaic_0001>

<llo_original>
// kernel: tpu_custom_call.1
$region0: #{tpu_custom_call.1}
  #allocation0 [shape = 'u32[]', space=smem, size = 0x4, offset = 0x4, fixed_abs, tag = 'smem constant byte address 0x4 - core index']
  #allocation1 [shape = 'u32[144,128]{1,0:T(1,128)}', space=vmem, size = 0x12000, scoped, tag = 'internal scratch']
  %s0 = inlined_call_operand.vmem [shape: f32[2,4,256], index: 0, kind: input, shape index: {}]
  %s1 = inlined_call_operand.vmem [shape: f32[32,4], index: 1, kind: input, shape index: {}]
  %s2 = inlined_call_operand.vmem [shape: f32[32,1], index: 2, kind: input, shape index: {}]
  %s3 = inlined_call_operand.vmem [shape: f32[2,32,1], index: 3, kind: input, shape index: {}]
  %s4 = inlined_call_operand.vmem [shape: f32[2,1,256], index: 4, kind: input, shape index: {}]
  %s5 = inlined_call_operand.hbm [shape: f32[2,32,256], index: 5, kind: output, shape index: {}]
  %s6 = sld [smem:[#allocation0]]
  $region53: #{tpu_custom_call.1} parent=0
    _
  %s8 = ssub.s32 1, %s6
  %s9 = scalar_select 0, %s8, %s6
  $region1: #{tpu_custom_call.1} parent=0
    #allocation2 [shape = 'u8[65536]{0}', space=vmem, size = 0x10000, scoped, tag = 'output window, operand 0']
    #allocation3 [shape = 's32[2]{0}', space=sflag, size = 0x8, scoped, tag = 'scoped memory for tpu_custom_call.1']
    %10 = vsyncpa [#allocation3], 0
    %s11 = scalar_lea.sflag [#allocation3], 1
    %12 = vsyncpa %s11, 0
    loop: start=0, step=1, limit=4
    $region2: #{tpu_custom_call.1} parent=1 // loop_pre_header
      _
    $region3: #{tpu_custom_call.1} parent=1 // loop_header
      %s14 = sphi 0, %s18
      %p15 = scmp.ge.s32.totalorder %s14, 4
      %s21 = sphi 0, %s33
      %s22 = sphi 0, %s29
      %s23 = sphi 0, %s21
      %s24 = sphi 0, %s22
      %s25 = sphi 0, %s23
      %s26 = sphi 0, %s24
      %s38 = sphi 0, %s40
      %s41 = sphi 0, %s38
      %s42 = sphi 0, %s41
      %s58 = sphi 0, %s42
      %s62 = sphi 0, %s62
      %s64 = sphi 0, %s62
      %s65 = sphi 0, %s64
      %s79 = sphi 0, %s65
      %s83 = sphi 0, %s83
      %s85 = sphi 0, %s83
      %s86 = sphi 0, %s85
      %s100 = sphi 0, %s86
      %s106 = sphi 0, %s108
      %s109 = sphi 0, %s106
      %s110 = sphi 0, %s109
      %s126 = sphi 0, %s110
      %s134 = sphi 0, %s136
      %s137 = sphi 0, %s134
      %s138 = sphi 0, %s137
      %s154 = sphi 0, %s138
      %s162 = sphi 0, %s164
      %s165 = sphi 0, %s162
      %s166 = sphi 0, %s165
      %s182 = sphi 0, %s166
    $region4: #{tpu_custom_call.1} parent=1 // loop_header_branch
      %17 = sbr.rel (%p15) target = $region8
    $region5: #{tpu_custom_call.1} parent=1 // loop_body
      %s19 = ssub.s32 %s14, 1
      %s20 = ssub.s32 %s14, 2
      %s27 = sadd.s32 1, %s22
      %p28 = scmp.ge.s32.totalorder %s27, 1
      %s29 = scalar_select %p28, 0, %s27
      %s30 = sadd.s32 1, %s21
      %s31 = scalar_select %p28, %s30, %s21
      %p32 = scmp.ge.s32.totalorder %s31, 2
      %s33 = scalar_select %p32, 0, %s31
      %s34 = ssub.s32 %s21, %s33
      %s35 = ssub.s32 %s22, %s29
      %s36 = sor.u32 %s34, %s35
      %p37 = scmp.eq.s32.totalorder %s36, 0
      %s39 = sadd.s32 %s38, 1
      %s40 = scalar_select %p37, %s38, %s39
      %p43 = pneg %p37
      %p44 = scmp.eq.s32.totalorder %s14, 1
      %p45 = por %p43, %p44
      %p46 = scmp.ne.s32.totalorder %s38, %s41
      %p47 = scmp.eq.s32.totalorder %s14, 0
      %p48 = por %p46, %p47
      %p49 = scmp.ne.s32.totalorder %s38, %s41
      %p50 = scmp.eq.s32.totalorder %s19, 1
      %p51 = por %p49, %p50
      %p52 = scmp.ne.s32.totalorder %s41, %s42
      %p53 = scmp.eq.s32.totalorder %s19, 0
      %p54 = por %p52, %p53
      %p55 = scmp.ne.s32.totalorder %s41, %s42
      %p56 = scmp.eq.s32.totalorder %s20, 1
      %p57 = por %p55, %p56
      %p59 = scmp.ne.s32.totalorder %s42, %s58
      %p60 = scmp.eq.s32.totalorder %s20, 0
      %p61 = por %p59, %p60
      %s63 = sadd.s32 %s62, 1
      %p66 = scmp.eq.s32.totalorder %s14, 1
      %p67 = scmp.ne.s32.totalorder %s62, %s64
      %p68 = scmp.eq.s32.totalorder %s14, 0
      %p69 = por %p67, %p68
      %p70 = scmp.ne.s32.totalorder %s62, %s64
      %p71 = scmp.eq.s32.totalorder %s19, 1
      %p72 = por %p70, %p71
      %p73 = scmp.ne.s32.totalorder %s64, %s65
      %p74 = scmp.eq.s32.totalorder %s19, 0
      %p75 = por %p73, %p74
      %p76 = scmp.ne.s32.totalorder %s64, %s65
      %p77 = scmp.eq.s32.totalorder %s20, 1
      %p78 = por %p76, %p77
      %p80 = scmp.ne.s32.totalorder %s65, %s79
      %p81 = scmp.eq.s32.totalorder %s20, 0
      %p82 = por %p80, %p81
      %s84 = sadd.s32 %s83, 1
      %p87 = scmp.eq.s32.totalorder %s14, 1
      %p88 = scmp.ne.s32.totalorder %s83, %s85
      %p89 = scmp.eq.s32.totalorder %s14, 0
      %p90 = por %p88, %p89
      %p91 = scmp.ne.s32.totalorder %s83, %s85
      %p92 = scmp.eq.s32.totalorder %s19, 1
      %p93 = por %p91, %p92
      %p94 = scmp.ne.s32.totalorder %s85, %s86
      %p95 = scmp.eq.s32.totalorder %s19, 0
      %p96 = por %p94, %p95
      %p97 = scmp.ne.s32.totalorder %s85, %s86
      %p98 = scmp.eq.s32.totalorder %s20, 1
      %p99 = por %p97, %p98
      %p101 = scmp.ne.s32.totalorder %s86, %s100
      %p102 = scmp.eq.s32.totalorder %s20, 0
      %p103 = por %p101, %p102
      %s104 = ssub.s32 %s21, %s33
      %p105 = scmp.eq.s32.totalorder %s104, 0
      %s107 = sadd.s32 %s106, 1
      %s108 = scalar_select %p105, %s106, %s107
      %p111 = pneg %p105
      %p112 = scmp.eq.s32.totalorder %s14, 1
      %p113 = por %p111, %p112
      %p114 = scmp.ne.s32.totalorder %s106, %s109
      %p115 = scmp.eq.s32.totalorder %s14, 0
      %p116 = por %p114, %p115
      %p117 = scmp.ne.s32.totalorder %s106, %s109
      %p118 = scmp.eq.s32.totalorder %s19, 1
      %p119 = por %p117, %p118
      %p120 = scmp.ne.s32.totalorder %s109, %s110
      %p121 = scmp.eq.s32.totalorder %s19, 0
      %p122 = por %p120, %p121
      %p123 = scmp.ne.s32.totalorder %s109, %s110
      %p124 = scmp.eq.s32.totalorder %s20, 1
      %p125 = por %p123, %p124
      %p127 = scmp.ne.s32.totalorder %s110, %s126
      %p128 = scmp.eq.s32.totalorder %s20, 0
      %p129 = por %p127, %p128
      %s130 = ssub.s32 %s21, %s33
      %s131 = ssub.s32 %s22, %s29
      %s132 = sor.u32 %s130, %s131
      %p133 = scmp.eq.s32.totalorder %s132, 0
      %s135 = sadd.s32 %s134, 1
      %s136 = scalar_select %p133, %s134, %s135
      %p139 = pneg %p133
      %p140 = scmp.eq.s32.totalorder %s14, 1
      %p141 = por %p139, %p140
      %p142 = scmp.ne.s32.totalorder %s134, %s137
      %p143 = scmp.eq.s32.totalorder %s14, 0
      %p144 = por %p142, %p143
      %p145 = scmp.ne.s32.totalorder %s134, %s137
      %p146 = scmp.eq.s32.totalorder %s19, 1
      %p147 = por %p145, %p146
      %p148 = scmp.ne.s32.totalorder %s137, %s138
      %p149 = scmp.eq.s32.totalorder %s19, 0
      %p150 = por %p148, %p149
      %p151 = scmp.ne.s32.totalorder %s137, %s138
      %p152 = scmp.eq.s32.totalorder %s20, 1
      %p153 = por %p151, %p152
      %p155 = scmp.ne.s32.totalorder %s138, %s154
      %p156 = scmp.eq.s32.totalorder %s20, 0
      %p157 = por %p155, %p156
      %s158 = ssub.s32 %s21, %s33
      %s159 = ssub.s32 %s22, %s29
      %s160 = sor.u32 %s158, %s159
      %p161 = scmp.eq.s32.totalorder %s160, 0
      %s163 = sadd.s32 %s162, 1
      %s164 = scalar_select %p161, %s162, %s163
      %p167 = pneg %p161
      %p168 = scmp.eq.s32.totalorder %s14, 1
      %p169 = por %p167, %p168
      %p170 = scmp.ne.s32.totalorder %s162, %s165
      %p171 = scmp.eq.s32.totalorder %s14, 0
      %p172 = por %p170, %p171
      %p173 = scmp.ne.s32.totalorder %s162, %s165
      %p174 = scmp.eq.s32.totalorder %s19, 1
      %p175 = por %p173, %p174
      %p176 = scmp.ne.s32.totalorder %s165, %s166
      %p177 = scmp.eq.s32.totalorder %s19, 0
      %p178 = por %p176, %p177
      %p179 = scmp.ne.s32.totalorder %s165, %s166
      %p180 = scmp.eq.s32.totalorder %s20, 1
      %p181 = por %p179, %p180
      %p183 = scmp.ne.s32.totalorder %s166, %s182
      %p184 = scmp.eq.s32.totalorder %s20, 0
      %p185 = por %p183, %p184
      %p186 = scmp.le.s32.totalorder 1, %s14
      %p187 = scmp.lt.s32.totalorder %s14, 3
      %p188 = pnand %p186, %p187
      %p189 = pneg %p188
      // Predicated region
      $region9: #{tpu_custom_call.1} parent=5 // pred_check
        _
      $region10: #{tpu_custom_call.1} parent=5 // pred_check_branch
        %191 = sbr.rel (%p188) target = $region12
      $region11: #{tpu_custom_call.1} parent=5 // pred_region
        %s192 = ssub.s32 %s14, 1
        // Predicated region
        $region13: #{tpu_custom_call.1} parent=11 // pred_check
          %p193 = pneg %p75
        $region14: #{tpu_custom_call.1} parent=11 // pred_check_branch
          %195 = sbr.rel (%p193) target = $region16
        $region15: #{tpu_custom_call.1} parent=11 // pred_region
          _
        $region16: #{tpu_custom_call.1} parent=11 // pred_fallthru
          _
        // Predicated region
        $region17: #{tpu_custom_call.1} parent=11 // pred_check
          %p196 = pneg %p96
        $region18: #{tpu_custom_call.1} parent=11 // pred_check_branch
          %198 = sbr.rel (%p196) target = $region20
        $region19: #{tpu_custom_call.1} parent=11 // pred_region
          _
        $region20: #{tpu_custom_call.1} parent=11 // pred_fallthru
          _
      $region12: #{tpu_custom_call.1} parent=5 // pred_fallthru
        _
      %p199 = scmp.lt.s32.totalorder %s14, 2
      // Predicated region
      $region21: #{tpu_custom_call.1} parent=5 // pred_check
        %p200 = pneg %p199
      $region22: #{tpu_custom_call.1} parent=5 // pred_check_branch
        %202 = sbr.rel (%p200) target = $region24
      $region23: #{tpu_custom_call.1} parent=5 // pred_region
        // Predicated region
        $region25: #{tpu_custom_call.1} parent=23 // pred_check
          %p203 = pneg %p48
        $region26: #{tpu_custom_call.1} parent=23 // pred_check_branch
          %205 = sbr.rel (%p203) target = $region28
        $region27: #{tpu_custom_call.1} parent=23 // pred_region
          %s206 = smul.u32 2, %s22
          %p207 = scmp.lt.s32.totalorder %s21, 1
          %s208 = scalar_select %p207, %s21, 1
          %p209 = scmp.lt.s32.totalorder %s206, 1
          %s210 = scalar_select %p209, %s206, 1
          %s211 = smul.addr %s208, 2
          %s212 = sadd.s32 %s210, %s211
          %s213 = smul.addr %s212, 4
          %s214 = scalar_lea.vmem %s0, %s213
          %s215 = smul.u32 2, %s22
        $region28: #{tpu_custom_call.1} parent=23 // pred_fallthru
          _
        // Predicated region
        $region29: #{tpu_custom_call.1} parent=23 // pred_check
          %p216 = pneg %p116
        $region30: #{tpu_custom_call.1} parent=23 // pred_check_branch
          %218 = sbr.rel (%p216) target = $region32
        $region31: #{tpu_custom_call.1} parent=23 // pred_region
          %p219 = scmp.lt.s32.totalorder %s21, 1
          %s220 = scalar_select %p219, %s21, 1
          %s221 = smul.addr %s220, 4
          %s222 = smul.addr %s221, 8
          %s223 = scalar_lea.vmem %s3, %s222
        $region32: #{tpu_custom_call.1} parent=23 // pred_fallthru
          _
        // Predicated region
        $region33: #{tpu_custom_call.1} parent=23 // pred_check
          %p224 = pneg %p144
        $region34: #{tpu_custom_call.1} parent=23 // pred_check_branch
          %226 = sbr.rel (%p224) target = $region36
        $region35: #{tpu_custom_call.1} parent=23 // pred_region
          %s227 = smul.u32 2, %s22
          %p228 = scmp.lt.s32.totalorder %s21, 1
          %s229 = scalar_select %p228, %s21, 1
          %p230 = scmp.lt.s32.totalorder %s227, 1
          %s231 = scalar_select %p230, %s227, 1
          %s232 = smul.addr %s229, 2
          %s233 = sadd.s32 %s231, %s232
          %s234 = scalar_lea.vmem %s4, %s233
          %s235 = smul.u32 2, %s22
        $region36: #{tpu_custom_call.1} parent=23 // pred_fallthru
          _
      $region24: #{tpu_custom_call.1} parent=5 // pred_fallthru
        _
      %p236 = scmp.le.s32.totalorder 1, %s14
      %p237 = scmp.lt.s32.totalorder %s14, 3
      %p238 = pnand %p236, %p237
      %p239 = pneg %p238
      // Predicated region
      $region37: #{tpu_custom_call.1} parent=5 // pred_check
        _
      $region38: #{tpu_custom_call.1} parent=5 // pred_check_branch
        %241 = sbr.rel (%p238) target = $region40
      $region39: #{tpu_custom_call.1} parent=5 // pred_region
        %s242 = ssub.s32 %s14, 1
        %s243 = smul.u32 2, %s24
        %p244 = scmp.lt.s32.totalorder %s23, 1
        %s245 = scalar_select %p244, %s23, 1
        %p246 = scmp.lt.s32.totalorder %s243, 1
        %s247 = scalar_select %p246, %s243, 1
        %s248 = smul.addr %s245, 2
        %s249 = sadd.s32 %s247, %s248
        %s250 = smul.addr %s249, 4
        %s251 = scalar_lea.vmem %s0, %s250
        %p252 = pneg %p54
        %p253 = pneg %p51
        %p254 = pneg %p75
        %p255 = pneg %p72
        %p256 = pneg %p96
        %p257 = pneg %p93
        %p258 = scmp.lt.s32.totalorder %s23, 1
        %s259 = scalar_select %p258, %s23, 1
        %s260 = smul.addr %s259, 4
        %s261 = smul.addr %s260, 8
        %s262 = scalar_lea.vmem %s3, %s261
        %p263 = pneg %p122
        %p264 = pneg %p119
        %s265 = smul.u32 2, %s24
        %p266 = scmp.lt.s32.totalorder %s23, 1
        %s267 = scalar_select %p266, %s23, 1
        %p268 = scmp.lt.s32.totalorder %s265, 1
        %s269 = scalar_select %p268, %s265, 1
        %s270 = smul.addr %s267, 2
        %s271 = sadd.s32 %s269, %s270
        %s272 = scalar_lea.vmem %s4, %s271
        %p273 = pneg %p150
        %p274 = pneg %p147
        %p275 = pneg %p178
        %p276 = pneg %p175
        %s277 = sand.u32 %s165, 1
        %s278 = scalar_lea.sflag [#allocation3], %s277
        %s279 = sand.u32 %s165, 1
        %s280 = smul.addr %s279, 64
        %s281 = scalar_lea.vmem [#allocation2], %s280
        %s282 = smul.u32 2, %s24
        %p283 = scmp.lt.s32.totalorder %s23, 1
        %s284 = scalar_select %p283, %s23, 1
        %p285 = scmp.lt.s32.totalorder %s282, 1
        %s286 = scalar_select %p285, %s282, 1
        %s287 = smul.addr %s284, 2
        %s288 = sadd.s32 %s286, %s287
        %s289 = smul.addr %s288, 4
        %s290 = scalar_lea.vmem %s0, %s289
        %s291 = smul.u32 2, %s24
        %p292 = scmp.lt.s32.totalorder %s23, 1
        %s293 = scalar_select %p292, %s23, 1
        %s294 = smul.addr %s293, 4
        %s295 = smul.addr %s294, 8
        %s296 = scalar_lea.vmem %s3, %s295
        %s297 = smul.u32 2, %s24
        %p298 = scmp.lt.s32.totalorder %s23, 1
        %s299 = scalar_select %p298, %s23, 1
        %p300 = scmp.lt.s32.totalorder %s297, 1
        %s301 = scalar_select %p300, %s297, 1
        %s302 = smul.addr %s299, 2
        %s303 = sadd.s32 %s301, %s302
        %s304 = scalar_lea.vmem %s4, %s303
        %s305 = smul.u32 2, %s24
        %s306 = smul.u32 2, %s24
        %v307 = vld [vmem:[%s290] sm:$0xff]
        %v308 = vld [vmem:[%s296] sm:$0xff]
        %v309 = vld [vmem:[%s296 + $0x8] sm:$0xff]
        %v310 = vld [vmem:[%s296 + $0x10] sm:$0xff]
        %v311 = vld [vmem:[%s296 + $0x18] sm:$0xff]
        %v312 = vld [vmem:[%s1] sm:$0xff]
        %v313 = vld [vmem:[%s1 + $0x8] sm:$0xff]
        %v314 = vld [vmem:[%s1 + $0x10] sm:$0xff]
        %v315 = vld [vmem:[%s1 + $0x18] sm:$0xff]
        %317 = vset.pattern.permute.xlu0 0
        %318 = vperm.xlu0 %317, %v308
        %v319 = vpop.permute.xlu0 %318
        %322 = vset.pattern.permute.xlu0 0
        %323 = vperm.xlu0 %322, %v309
        %v324 = vpop.permute.xlu0 %323
        %327 = vset.pattern.permute.xlu0 0
        %328 = vperm.xlu0 %327, %v310
        %v329 = vpop.permute.xlu0 %328
        %332 = vset.pattern.permute.xlu0 0
        %333 = vperm.xlu0 %332, %v311
        %v334 = vpop.permute.xlu0 %333
        %v336 = vmul.f32 %v312, %v319
        %v337 = vmul.f32 %v313, %v324
        %v338 = vmul.f32 %v314, %v329
        %v339 = vmul.f32 %v315, %v334
        %v340 = vld [vmem:[%s2] sm:$0xff]
        %v341 = vld [vmem:[%s2 + $0x8] sm:$0xff]
        %v342 = vld [vmem:[%s2 + $0x10] sm:$0xff]
        %v343 = vld [vmem:[%s2 + $0x18] sm:$0xff]
        %v344 = vmul.f32 %v340, %v308
        %v345 = vmul.f32 %v341, %v309
        %v346 = vmul.f32 %v342, %v310
        %v347 = vmul.f32 %v343, %v311
        %349 = vset.pattern.permute.xlu0 0
        %350 = vperm.xlu0 %349, %v344
        %v351 = vpop.permute.xlu0 %350
        %354 = vset.pattern.permute.xlu0 0
        %355 = vperm.xlu0 %354, %v345
        %v356 = vpop.permute.xlu0 %355
        %359 = vset.pattern.permute.xlu0 0
        %360 = vperm.xlu0 %359, %v346
        %v361 = vpop.permute.xlu0 %360
        %364 = vset.pattern.permute.xlu0 0
        %365 = vperm.xlu0 %364, %v347
        %v366 = vpop.permute.xlu0 %365
        %v369 = vcombine.high %v307, %v307
        %vm370 = vcmask 31744
        %v372 = vsel %vm370, %v336, 0
        %v375 = vsel %vm370, %v337, 0
        %v378 = vsel %vm370, %v338, 0
        %v381 = vsel %vm370, %v339, 0
        %vm383 = vcmask 1043456
        %v384 = vsel %vm383, %v307, 0
        %v386 = vsel %vm383, %v369, 0
        %388 = vmatprep.subr.mxu0 %v386
        %389 = vmatpush1.msra.mxu0 %v384
        %390 = vmatprep.subr.mxu0 0.0
        %391 = vmatpush1.msra.mxu0 0.0
        %392 = vmatprep.subr.mxu0 0.0
        %393 = vmatpush1.msra.mxu0 0.0
        %394 = vmatprep.subr.mxu0 0.0
        %395 = vmatpush1.msra.mxu0 0.0
        %396 = vmatprep.subr.mxu0 0.0
        %397 = vmatpush1.msra.mxu0 0.0
        %398 = vmatprep.subr.mxu0 0.0
        %399 = vmatpush1.msra.mxu0 0.0
        %400 = vmatprep.subr.mxu0 0.0
        %401 = vmatpush1.msra.mxu0 0.0
        %402 = vmatprep.subr.mxu0 0.0
        %403 = vmatpush1.msra.mxu0 0.0
        %404 = vmatprep.subr.mxu0 0.0
        %405 = vmatpush1.msra.mxu0 0.0
        %406 = vmatprep.subr.mxu0 0.0
        %407 = vmatpush1.msra.mxu0 0.0
        %408 = vmatprep.subr.mxu0 0.0
        %409 = vmatpush1.msra.mxu0 0.0
        %410 = vmatprep.subr.mxu0 0.0
        %411 = vmatpush1.msra.mxu0 0.0
        %412 = vmatprep.subr.mxu0 0.0
        %413 = vmatpush1.msra.mxu0 0.0
        %414 = vmatprep.subr.mxu0 0.0
        %415 = vmatpush1.msra.mxu0 0.0
        %416 = vmatprep.subr.mxu0 0.0
        %417 = vmatpush1.msra.mxu0 0.0
        %418 = vmatprep.subr.mxu0 0.0
        %419 = vmatpush1.msra.mxu0 0.0
        %420 = vmatprep.subr.mxu0 0.0
        %421 = vmatpush1.msra.mxu0 0.0
        %422 = vmatprep.subr.mxu0 0.0
        %423 = vmatpush1.msra.mxu0 0.0
        %424 = vmatprep.subr.mxu0 0.0
        %425 = vmatpush1.msra.mxu0 0.0
        %426 = vmatprep.subr.mxu0 0.0
        %427 = vmatpush1.msra.mxu0 0.0
        %428 = vmatprep.subr.mxu0 0.0
        %429 = vmatpush1.msra.mxu0 0.0
        %430 = vmatprep.subr.mxu0 0.0
        %431 = vmatpush1.msra.mxu0 0.0
        %432 = vmatprep.subr.mxu0 0.0
        %433 = vmatpush1.msra.mxu0 0.0
        %434 = vmatprep.subr.mxu0 0.0
        %435 = vmatpush1.msra.mxu0 0.0
        %436 = vmatprep.subr.mxu0 0.0
        %437 = vmatpush1.msra.mxu0 0.0
        %438 = vmatprep.subr.mxu0 0.0
        %439 = vmatpush1.msra.mxu0 0.0
        %440 = vmatprep.subr.mxu0 0.0
        %441 = vmatpush1.msra.mxu0 0.0
        %442 = vmatprep.subr.mxu0 0.0
        %443 = vmatpush1.msra.mxu0 0.0
        %444 = vmatprep.subr.mxu0 0.0
        %445 = vmatpush1.msra.mxu0 0.0
        %446 = vmatprep.subr.mxu0 0.0
        %447 = vmatpush1.msra.mxu0 0.0
        %448 = vmatprep.subr.mxu0 0.0
        %449 = vmatpush1.msra.mxu0 0.0
        %450 = vmatprep.subr.mxu0 0.0
        %451 = vmatpush1.msra.mxu0 0.0
        %452 = vmatprep.mubr.f32.mxu0 0.0
        %453 = vmatmul.mubr.f32.gmra.mrb[0].mxu0 %v372
        %v454 = vpop.f32.mrb[0].mxu0
        %v455 = vadd.f32 %v351, %v454
        %v456 = vpop.f32.mrb[0].mxu0
        %v457 = vadd.f32 %v351, %v456
        %458 = vmatprep.mubr.f32.mxu0 0.0
        %459 = vmatmul.mubr.f32.gmra.mrb[0].mxu0 %v375
        %v460 = vpop.f32.mrb[0].mxu0
        %v461 = vadd.f32 %v356, %v460
        %v462 = vpop.f32.mrb[0].mxu0
        %v463 = vadd.f32 %v356, %v462
        %464 = vmatprep.mubr.f32.mxu0 0.0
        %465 = vmatmul.mubr.f32.gmra.mrb[0].mxu0 %v378
        %v466 = vpop.f32.mrb[0].mxu0
        %v467 = vadd.f32 %v361, %v466
        %v468 = vpop.f32.mrb[0].mxu0
        %v469 = vadd.f32 %v361, %v468
        %470 = vmatprep.mubr.f32.mxu0 0.0
        %471 = vmatmul.mubr.f32.gmra.mrb[0].mxu0 %v381
        %v472 = vpop.f32.mrb[0].mxu0
        %v473 = vadd.f32 %v366, %v472
        %v474 = vpop.f32.mrb[0].mxu0
        %v475 = vadd.f32 %v366, %v474
        %476 = vdwg.mxu0
        %v477 = vmul.f32 %v455, %v455
        %v478 = vmul.f32 %v457, %v457
        %v479 = vmul.f32 %v461, %v461
        %v480 = vmul.f32 %v463, %v463
        %v481 = vmul.f32 %v467, %v467
        %v482 = vmul.f32 %v469, %v469
        %v483 = vmul.f32 %v473, %v473
        %v484 = vmul.f32 %v475, %v475
        %v485 = vadd.f32 %v477, %v479
        %v486 = vadd.f32 %v485, %v481
        %v487 = vadd.f32 %v486, %v483
        %v488 = vrot.slane %v487, 4
        %v489 = vadd.f32 %v487, %v488
        %v490 = vrot.slane %v489, 2
        %v491 = vadd.f32 %v489, %v490
        %v492 = vrot.slane %v491, 1
        %v493 = vadd.f32 %v491, %v492
        %v494 = vadd.f32 %v478, %v480
        %v495 = vadd.f32 %v494, %v482
        %v496 = vadd.f32 %v495, %v484
        %v497 = vrot.slane %v496, 4
        %v498 = vadd.f32 %v496, %v497
        %v499 = vrot.slane %v498, 2
        %v500 = vadd.f32 %v498, %v499
        %v501 = vrot.slane %v500, 1
        %v502 = vadd.f32 %v500, %v501
        %v503 = vmax.f32 %v493, 1e-24
        %v504 = vmax.f32 %v502, 1e-24
        %v505 = vrsqrt.pop %v503
        %v506 = vrsqrt.pop %v504
        %v507 = vld [vmem:[%s304] sm:$0x3]
        %v509 = vlaneseq
        %v510 = vshrl.u32 %v509, 7
        %v511 = vsub.s32 0, %v510
        %v512 = vrot.slane %v507, %v511
        %v513 = vlaneseq
        %v514 = vshrl.u32 %v513, 7
        %v515 = vsub.s32 1, %v514
        %v516 = vrot.slane %v507, %v515
        %v519 = vmul.f32 %v505, %v512
        %v520 = vmul.f32 %v506, %v516
        %v521 = vlaneseq
        %v522 = vshrl.u32 %v521, 7
        %v523 = vsub.s32 0, %v522
        %v524 = vrot.slane %v519, %v523
        %v525 = vlaneseq
        %v526 = vshrl.u32 %v525, 7
        %v527 = vsub.s32 0, %v526
        %v528 = vrot.slane %v520, %v527
        %v529 = vmul.f32 %v455, %v524
        %v530 = vmul.f32 %v457, %v528
        %v531 = vmul.f32 %v461, %v524
        %v532 = vmul.f32 %v463, %v528
        %v533 = vmul.f32 %v467, %v524
        %v534 = vmul.f32 %v469, %v528
        %v535 = vmul.f32 %v473, %v524
        %v536 = vmul.f32 %v475, %v528
        %537 = vst [vmem:[%s281] sm:$0xff] %v529
        %538 = vst [vmem:[%s281 + $0x8] sm:$0xff] %v530
        %539 = vst [vmem:[%s281 + $0x10] sm:$0xff] %v531
        %540 = vst [vmem:[%s281 + $0x18] sm:$0xff] %v532
        %541 = vst [vmem:[%s281 + $0x20] sm:$0xff] %v533
        %542 = vst [vmem:[%s281 + $0x28] sm:$0xff] %v534
        %543 = vst [vmem:[%s281 + $0x30] sm:$0xff] %v535
        %544 = vst [vmem:[%s281 + $0x38] sm:$0xff] %v536
        %s545 = sand.u32 %s165, 1
        %s546 = scalar_lea.sflag [#allocation3], %s545
        %s547 = sand.u32 %s165, 1
        %s548 = smul.addr %s547, 64
        %s549 = scalar_lea.vmem [#allocation2], %s548
        // Predicated region
        $region41: #{tpu_custom_call.1} parent=39 // pred_check
          %p550 = pneg %p175
        $region42: #{tpu_custom_call.1} parent=39 // pred_check_branch
          %552 = sbr.rel (%p550) target = $region44
        $region43: #{tpu_custom_call.1} parent=39 // pred_region
          %s553 = smul.u32 2, %s24
          %s555 = ssub.s32 1024, 1024
          %556 = vsyncadd %s546, %s555
          %s557 = smul.addr %s23, 8
          %s558 = sadd.s32 %s553, %s557
          %s559 = smul.addr %s558, 128
          %s560 = scalar_lea.hbm %s5, %s559
          %s561 = sshll.u32 %s549, 4
          %s562 = int_to_ptr.vmem [resolvable:$true] %s561
          %567 = dma.vmem_to_hbm [thread:$0]  %s562, 1024, %s560, %s546, 256, 256, 16
        $region44: #{tpu_custom_call.1} parent=39 // pred_fallthru
          _
      $region40: #{tpu_custom_call.1} parent=5 // pred_fallthru
        _
      %p568 = scmp.le.s32.totalorder 2, %s14
      // Predicated region
      $region45: #{tpu_custom_call.1} parent=5 // pred_check
        %p569 = pneg %p568
      $region46: #{tpu_custom_call.1} parent=5 // pred_check_branch
        %571 = sbr.rel (%p569) target = $region48
      $region47: #{tpu_custom_call.1} parent=5 // pred_region
        %s572 = ssub.s32 %s14, 2
        // Predicated region
        $region49: #{tpu_custom_call.1} parent=47 // pred_check
          %p573 = pneg %p181
        $region50: #{tpu_custom_call.1} parent=47 // pred_check_branch
          %575 = sbr.rel (%p573) target = $region52
        $region51: #{tpu_custom_call.1} parent=47 // pred_region
          %s576 = sand.u32 %s166, 1
          %s577 = scalar_lea.sflag [#allocation3], %s576
          %s578 = sand.u32 %s166, 1
          %s579 = smul.addr %s578, 64
          %s580 = scalar_lea.vmem [#allocation2], %s579
          %581 = dma.done %s577, 1024
        $region52: #{tpu_custom_call.1} parent=47 // pred_fallthru
          _
      $region48: #{tpu_custom_call.1} parent=5 // pred_fallthru
        _
    $region6: #{tpu_custom_call.1} parent=1 // loop_footer
      %s18 = sadd.s32 1, %s14
    $region7: #{tpu_custom_call.1} parent=1 // loop_footer_branch
      %13 = sbr.rel target = $region3
    $region8: #{tpu_custom_call.1} parent=1 // loop_exit
      _
    %582 = vsyncpa [#allocation3], 1
    %s583 = scalar_lea.sflag [#allocation3], 1
    %584 = vsyncpa %s583, 1

</llo_original>
